<compile_context>
chip_gen: v6e
topology: v6e:2x2x1
jax: 0.10.0
libtpu: 0.0.40
codegen_flags: <defaults>
</compile_context>

<pallas_src>
import functools

import jax
import jax.numpy as jnp
from jax.experimental import pallas as pl
from jax.experimental.pallas import tpu as pltpu


def _round_up(x: int, m: int) -> int:
    return (x + m - 1) // m * m


def _sublane(dtype) -> int:
    """Sublane granule for a dtype: 8 (32-bit), 16 (16-bit), 32 (8-bit)."""
    bits = jnp.dtype(dtype).itemsize * 8
    return max(8, 256 // bits)


def _vmem_footprint_bytes(rows: int, cols: int, dtype) -> int:
    """On-chip footprint of a 2-D VMEM buffer ((sublane,128)-tiled layout)."""
    dt = jnp.dtype(dtype)
    return _round_up(rows, _sublane(dt)) * _round_up(cols, 128) * dt.itemsize


def _vmem_cap_bytes() -> int:
    """~85% of physical VMEM on this generation; conservative 64 MiB fallback."""
    try:
        cap = int(pltpu.get_tpu_info().vmem_capacity_bytes)
    except Exception:
        cap = 64 * 1024 * 1024
    return int(cap * 0.85)


def _fused_head_kernel(*refs, nlayers: int):
    # refs = (x_ref, w_0, b_0, ..., w_{L-1}, b_{L-1}, o_ref)
    x_ref = refs[0]
    o_ref = refs[-1]
    h = x_ref[...]
    for i in range(nlayers):
        w_ref = refs[1 + 2 * i]
        b_ref = refs[2 + 2 * i]
        # MXU matmul in the weight dtype, f32 accumulation.
        h = jnp.dot(h.astype(w_ref.dtype), w_ref[...],
                    preferred_element_type=jnp.float32)
        h = h + b_ref[...].astype(jnp.float32)
        if i < nlayers - 1:
            h = jnp.maximum(h, 0.0)
    o_ref[...] = h.astype(o_ref.dtype)


def prepare_projection_head_params(params, param_dtype=None):
    """One-time host prep: nn.Linear (out,in) weights -> (in,out); bias -> (1,out).

    Do this at init / checkpoint load, NOT per forward call, so the kernel's own
    weight DMA is the only per-step parameter traffic.  Pass
    param_dtype=jnp.bfloat16 to halve weight HBM/VMEM bytes (f32 accumulation is
    kept inside the kernel).
    """
    prepared = []
    for (w, b) in params:
        wt = jnp.asarray(w).T  # (Din, Dout), materialized now
        bp = jnp.asarray(b).reshape(1, -1)
        if param_dtype is not None:
            wt = wt.astype(param_dtype)
            bp = bp.astype(param_dtype)
        prepared.append((wt, bp))
    return prepared


def projection_head_forward(x, prepared_params, *, block_batch: int = 256):
    """Fused ProjectionHead forward.

    prepared_params = [(w_t_i, b_i)] from prepare_projection_head_params:
      w_t_i : (Din_i, Dout_i), b_i : (1, Dout_i).
    """
    B, in_dim = x.shape
    nlayers = len(prepared_params)
    dims = [in_dim] + [w.shape[1] for (w, _) in prepared_params]
    for i, (w, b) in enumerate(prepared_params):
        assert w.shape[0] == dims[i], "layer input dim mismatch"
        assert b.shape == (1, w.shape[1]), "bias shape mismatch"
    out_dim = dims[-1]

    # Batch tile: multiple of the dtype's sublane granule; partial trailing tile
    # is handled by Pallas (no host batch padding, no wasted full-tile compute).
    sub = _sublane(x.dtype)
    tm = max(sub, min(_round_up(block_batch, sub), _round_up(B, sub)))
    grid = (pl.cdiv(B, tm),)

    flat_inputs = [x]
    in_specs = [pl.BlockSpec((tm, in_dim), lambda i: (i, 0))]
    for (w, b) in prepared_params:
        flat_inputs += [w, b]
        # Block == full array dims -> weights/biases stay resident across batch
        # tiles (constant index_map), and the (8,128) rule is trivially satisfied.
        in_specs += [
            pl.BlockSpec(w.shape, lambda i: (0, 0)),
            pl.BlockSpec(b.shape, lambda i: (0, 0)),
        ]

    out_specs = pl.BlockSpec((tm, out_dim), lambda i: (i, 0))
    out_shape = jax.ShapeDtypeStruct((B, out_dim), x.dtype)

    # Tile-based VMEM estimate: double-buffered x/out tiles and params, plus f32
    # working activations, all at their real (sublane,128)-tiled footprint.
    est = 2 * _vmem_footprint_bytes(tm, in_dim, x.dtype)
    est += 2 * _vmem_footprint_bytes(tm, out_dim, x.dtype)
    for (w, b) in prepared_params:
        est += 2 * _vmem_footprint_bytes(w.shape[0], w.shape[1], w.dtype)
        est += 2 * _vmem_footprint_bytes(b.shape[0], b.shape[1], b.dtype)
    est += 3 * _vmem_footprint_bytes(tm, max(dims), jnp.float32)
    vmem_limit = int(min(max(int(est * 1.5), 32 * 1024 * 1024), _vmem_cap_bytes()))

    kernel = functools.partial(_fused_head_kernel, nlayers=nlayers)
    return pl.pallas_call(
        kernel,
        out_shape=out_shape,
        grid=grid,
        in_specs=in_specs,
        out_specs=out_specs,
        compiler_params=pltpu.CompilerParams(
            dimension_semantics=("parallel",),
            vmem_limit_bytes=vmem_limit,
        ),
    )(*flat_inputs)


def init_projection_head_params(key, in_dim, out_dim, nlayers=1):
    """Mimics nn.Linear default init (uniform +/- 1/sqrt(fan_in)), per-layer fan_in."""
    shapes = [(in_dim, in_dim)] * (nlayers - 1) + [(out_dim, in_dim)]
    params = []
    for (dout, din) in shapes:
        key, kw, kb = jax.random.split(key, 3)
        bound = 1.0 / (din ** 0.5)
        w = jax.random.uniform(kw, (dout, din), jnp.float32, -bound, bound)
        b = jax.random.uniform(kb, (dout,), jnp.float32, -bound, bound)
        params.append((w, b))
    return params


def projection_head_reference(x, params):
    n = len(params)
    for i, (w, b) in enumerate(params):
        x = x @ w.T + b
        if i < n - 1:
            x = jnp.maximum(x, 0.0)
    return x


if __name__ == "__main__":
    key = jax.random.PRNGKey(0)
    batch, in_dim, out_dim, nlayers = 8, 32, 16, 2

    key, kx, kp = jax.random.split(key, 3)
    x = jax.random.normal(kx, (batch, in_dim), jnp.float32)
    params = init_projection_head_params(kp, in_dim, out_dim, nlayers)
    prepared = prepare_projection_head_params(params)  # once per model

    out = jax.block_until_ready(projection_head_forward(x, prepared))
    ref = projection_head_reference(x, params)
    assert out.shape == (batch, out_dim)
    assert jnp.allclose(out, ref, atol=1e-5, rtol=1e-5)

    # nlayers == 1 (single final Linear, no ReLU).
    params1 = init_projection_head_params(jax.random.PRNGKey(1), in_dim, out_dim, 1)
    prepared1 = prepare_projection_head_params(params1)
    out1 = jax.block_until_ready(projection_head_forward(x, prepared1))
    ref1 = projection_head_reference(x, params1)
    assert out1.shape == (batch, out_dim)
    assert jnp.allclose(out1, ref1, atol=1e-5, rtol=1e-5)

    # Non-multiple batch: exercises the partial trailing batch tile (no host pad).
    key, kx2 = jax.random.split(key)
    x2 = jax.random.normal(kx2, (13, in_dim), jnp.float32)
    out2 = jax.block_until_ready(projection_head_forward(x2, prepared, block_batch=8))
    ref2 = projection_head_reference(x2, params)
    assert out2.shape == (13, out_dim)
    assert jnp.allclose(out2, ref2, atol=1e-5, rtol=1e-5)

    print("KERNEL_OK")
</pallas_src>

<mosaic_0001>
module attributes {stable_mosaic.version = 11 : i64} {
  func.func @_fused_head_kernel(%arg0: i32, %arg1: memref<8x32xf32, #tpu.memory_space<vmem>>, %arg2: memref<32x32xf32, #tpu.memory_space<vmem>>, %arg3: memref<1x32xf32, #tpu.memory_space<vmem>>, %arg4: memref<32x16xf32, #tpu.memory_space<vmem>>, %arg5: memref<1x16xf32, #tpu.memory_space<vmem>>, %arg6: memref<8x16xf32, #tpu.memory_space<vmem>>) attributes {dimension_semantics = [#tpu.dimension_semantics<parallel>], iteration_bounds = array<i64: 1>, scalar_prefetch = 0 : i64, scratch_operands = 0 : i64, tpu.core_type = #tpu.core_type<tc>, window_params = [{transform_indices = @transform_0, window_bounds = array<i64: 8, 32>}, {pipeline_mode = #tpu.pipeline_mode<synchronous>, transform_indices = @transform_1, window_bounds = array<i64: 32, 32>}, {pipeline_mode = #tpu.pipeline_mode<synchronous>, transform_indices = @transform_2, window_bounds = array<i64: 1, 32>}, {pipeline_mode = #tpu.pipeline_mode<synchronous>, transform_indices = @transform_3, window_bounds = array<i64: 32, 16>}, {pipeline_mode = #tpu.pipeline_mode<synchronous>, transform_indices = @transform_4, window_bounds = array<i64: 1, 16>}, {transform_indices = @transform_5, window_bounds = array<i64: 8, 16>}]} {
    %c0 = arith.constant 0 : index
    %c0_0 = arith.constant 0 : index
    %0 = vector.load %arg1[%c0, %c0_0] : memref<8x32xf32, #tpu.memory_space<vmem>>, vector<8x32xf32>
    %c0_1 = arith.constant 0 : index
    %c0_2 = arith.constant 0 : index
    %1 = vector.load %arg2[%c0_1, %c0_2] : memref<32x32xf32, #tpu.memory_space<vmem>>, vector<32x32xf32>
    %cst = arith.constant dense<0.000000e+00> : vector<8x32xf32>
    %2 = tpu.matmul %0, %1, %cst {dimension_numbers = #tpu.dot_dimension_numbers<[1], [0], [0], [1], [0, 0, 1, 1], [], []>} : vector<8x32xf32>, vector<32x32xf32>, vector<8x32xf32> -> vector<8x32xf32>
    %c0_3 = arith.constant 0 : index
    %c0_4 = arith.constant 0 : index
    %3 = vector.load %arg3[%c0_3, %c0_4] : memref<1x32xf32, #tpu.memory_space<vmem>>, vector<1x32xf32>
    %4 = vector.broadcast %3 : vector<1x32xf32> to vector<8x32xf32>
    %5 = arith.addf %2, %4 : vector<8x32xf32>
    %cst_5 = arith.constant 0.000000e+00 : f32
    %6 = vector.broadcast %cst_5 : f32 to vector<8x32xf32>
    %7 = arith.maximumf %5, %6 : vector<8x32xf32>
    %c0_6 = arith.constant 0 : index
    %c0_7 = arith.constant 0 : index
    %8 = vector.load %arg4[%c0_6, %c0_7] : memref<32x16xf32, #tpu.memory_space<vmem>>, vector<32x16xf32>
    %cst_8 = arith.constant dense<0.000000e+00> : vector<8x16xf32>
    %9 = tpu.matmul %7, %8, %cst_8 {dimension_numbers = #tpu.dot_dimension_numbers<[1], [0], [0], [1], [0, 0, 1, 1], [], []>} : vector<8x32xf32>, vector<32x16xf32>, vector<8x16xf32> -> vector<8x16xf32>
    %c0_9 = arith.constant 0 : index
    %c0_10 = arith.constant 0 : index
    %10 = vector.load %arg5[%c0_9, %c0_10] : memref<1x16xf32, #tpu.memory_space<vmem>>, vector<1x16xf32>
    %11 = vector.broadcast %10 : vector<1x16xf32> to vector<8x16xf32>
    %12 = arith.addf %9, %11 : vector<8x16xf32>
    %c0_11 = arith.constant 0 : index
    %c0_12 = arith.constant 0 : index
    %13 = vector.load %arg6[%c0_11, %c0_12] : memref<8x16xf32, #tpu.memory_space<vmem>>, vector<8x16xf32>
    tpu.vector_store %arg6[%c0_11, %c0_12], %12 {strides = array<i32>} : memref<8x16xf32, #tpu.memory_space<vmem>>, vector<8x16xf32>,
    return
  }
  func.func @transform_0(%arg0: i32) -> (i32, i32) {
    %c0_i32 = arith.constant 0 : i32
    %c0_i32_0 = arith.constant 0 : i32
    return %arg0, %c0_i32 : i32, i32
  }
  func.func @transform_1(%arg0: i32) -> (i32, i32) {
    %c0_i32 = arith.constant 0 : i32
    %c0_i32_0 = arith.constant 0 : i32
    %c0_i32_1 = arith.constant 0 : i32
    return %c0_i32, %c0_i32_0 : i32, i32
  }
  func.func @transform_2(%arg0: i32) -> (i32, i32) {
    %c0_i32 = arith.constant 0 : i32
    %c0_i32_0 = arith.constant 0 : i32
    %c0_i32_1 = arith.constant 0 : i32
    return %c0_i32, %c0_i32_0 : i32, i32
  }
  func.func @transform_3(%arg0: i32) -> (i32, i32) {
    %c0_i32 = arith.constant 0 : i32
    %c0_i32_0 = arith.constant 0 : i32
    %c0_i32_1 = arith.constant 0 : i32
    return %c0_i32, %c0_i32_0 : i32, i32
  }
  func.func @transform_4(%arg0: i32) -> (i32, i32) {
    %c0_i32 = arith.constant 0 : i32
    %c0_i32_0 = arith.constant 0 : i32
    %c0_i32_1 = arith.constant 0 : i32
    return %c0_i32, %c0_i32_0 : i32, i32
  }
  func.func @transform_5(%arg0: i32) -> (i32, i32) {
    %c0_i32 = arith.constant 0 : i32
    %c0_i32_0 = arith.constant 0 : i32
    return %arg0, %c0_i32 : i32, i32
  }
}

</mosaic_0001>

<llo_original>
// kernel: tpu_custom_call.1
$region0: #{tpu_custom_call.1}
  #allocation0 [shape = 'u32[]', space=smem, size = 0x4, offset = 0x4, fixed_abs, tag = 'smem constant byte address 0x4 - core index']
  #allocation1 [shape = 'u32[144,128]{1,0:T(1,128)}', space=vmem, size = 0x12000, scoped, tag = 'internal scratch']
  %s0 = inlined_call_operand.vmem [shape: f32[8,32], index: 0, kind: input, shape index: {}]
  %s1 = inlined_call_operand.vmem [shape: f32[32,32], index: 1, kind: input, shape index: {}]
  %s2 = inlined_call_operand.vmem [shape: f32[1,32], index: 2, kind: input, shape index: {}]
  %s3 = inlined_call_operand.vmem [shape: f32[32,16], index: 3, kind: input, shape index: {}]
  %s4 = inlined_call_operand.vmem [shape: f32[1,16], index: 4, kind: input, shape index: {}]
  %s5 = inlined_call_operand.hbm [shape: f32[8,16], index: 5, kind: output, shape index: {}]
  %s6 = sld [smem:[#allocation0]]
  $region30: #{tpu_custom_call.1} parent=0
    _
  %s8 = ssub.s32 1, %s6
  %s9 = scalar_select 0, %s8, %s6
  $region1: #{tpu_custom_call.1} parent=0
    #allocation2 [shape = 'u8[4096]{0}', space=vmem, size = 0x1000, scoped, tag = 'output window, operand 0, single buffered']
    #allocation3 [shape = 's32[1]{0}', space=sflag, size = 0x4, scoped, tag = 'scoped memory for tpu_custom_call.1']
    %10 = vsyncpa [#allocation3], 0
    // Predicated region
    $region2: #{tpu_custom_call.1} parent=1 // pred_check
      _
    $region3: #{tpu_custom_call.1} parent=1 // pred_check_branch
      %12 = sbr.rel (0) target = $region5
    $region4: #{tpu_custom_call.1} parent=1 // pred_region
      _
    $region5: #{tpu_custom_call.1} parent=1 // pred_fallthru
      _
    // Predicated region
    $region6: #{tpu_custom_call.1} parent=1 // pred_check
      _
    $region7: #{tpu_custom_call.1} parent=1 // pred_check_branch
      %14 = sbr.rel (0) target = $region9
    $region8: #{tpu_custom_call.1} parent=1 // pred_region
      _
    $region9: #{tpu_custom_call.1} parent=1 // pred_fallthru
      _
    // Predicated region
    $region10: #{tpu_custom_call.1} parent=1 // pred_check
      _
    $region11: #{tpu_custom_call.1} parent=1 // pred_check_branch
      %16 = sbr.rel (0) target = $region13
    $region12: #{tpu_custom_call.1} parent=1 // pred_region
      _
    $region13: #{tpu_custom_call.1} parent=1 // pred_fallthru
      _
    // Predicated region
    $region14: #{tpu_custom_call.1} parent=1 // pred_check
      _
    $region15: #{tpu_custom_call.1} parent=1 // pred_check_branch
      %18 = sbr.rel (0) target = $region17
    $region16: #{tpu_custom_call.1} parent=1 // pred_region
      _
    $region17: #{tpu_custom_call.1} parent=1 // pred_fallthru
      _
    // Predicated region
    $region18: #{tpu_custom_call.1} parent=1 // pred_check
      _
    $region19: #{tpu_custom_call.1} parent=1 // pred_check_branch
      %20 = sbr.rel (0) target = $region21
    $region20: #{tpu_custom_call.1} parent=1 // pred_region
      _
    $region21: #{tpu_custom_call.1} parent=1 // pred_fallthru
      _
    %v21 = vld [vmem:[%s0] sm:$0xff]
    %v22 = vld [vmem:[%s1] sm:$0xff]
    %v23 = vld [vmem:[%s1 + $0x8] sm:$0xff]
    %v24 = vld [vmem:[%s1 + $0x10] sm:$0xff]
    %v25 = vld [vmem:[%s1 + $0x18] sm:$0xff]
    %v26 = vld [vmem:[%s2] sm:$0x1]
    %v28 = vlaneseq
    %v29 = vshrl.u32 %v28, 7
    %v30 = vsub.s32 0, %v29
    %v31 = vrot.slane %v26, %v30
    %vm33 = vcmask 261120
    %v35 = vsel %vm33, %v21, 0
    %37 = vmatprep.subr.mxu0 0.0
    %38 = vmatpush1.msra.mxu0 0.0
    %39 = vmatprep.subr.mxu0 0.0
    %40 = vmatpush1.msra.mxu0 0.0
    %41 = vmatprep.subr.mxu0 0.0
    %42 = vmatpush1.msra.mxu0 0.0
    %43 = vmatprep.subr.mxu0 0.0
    %44 = vmatpush1.msra.mxu0 0.0
    %45 = vmatprep.subr.mxu0 0.0
    %46 = vmatpush1.msra.mxu0 0.0
    %47 = vmatprep.subr.mxu0 0.0
    %48 = vmatpush1.msra.mxu0 0.0
    %49 = vmatprep.subr.mxu0 0.0
    %50 = vmatpush1.msra.mxu0 0.0
    %51 = vmatprep.subr.mxu0 0.0
    %52 = vmatpush1.msra.mxu0 0.0
    %53 = vmatprep.subr.mxu0 0.0
    %54 = vmatpush1.msra.mxu0 0.0
    %55 = vmatprep.subr.mxu0 0.0
    %56 = vmatpush1.msra.mxu0 0.0
    %57 = vmatprep.subr.mxu0 0.0
    %58 = vmatpush1.msra.mxu0 0.0
    %59 = vmatprep.subr.mxu0 0.0
    %60 = vmatpush1.msra.mxu0 0.0
    %61 = vmatprep.subr.mxu0 0.0
    %62 = vmatpush1.msra.mxu0 %v25
    %63 = vmatprep.subr.mxu0 0.0
    %64 = vmatpush1.msra.mxu0 %v24
    %65 = vmatprep.subr.mxu0 0.0
    %66 = vmatpush1.msra.mxu0 %v23
    %67 = vmatprep.subr.mxu0 0.0
    %68 = vmatpush1.msra.mxu0 %v22
    %69 = vmatprep.subr.mxu0 0.0
    %70 = vmatpush2.msra.mxu0 0.0
    %71 = vmatprep.subr.mxu0 0.0
    %72 = vmatpush2.msra.mxu0 0.0
    %73 = vmatprep.subr.mxu0 0.0
    %74 = vmatpush2.msra.mxu0 0.0
    %75 = vmatprep.subr.mxu0 0.0
    %76 = vmatpush2.msra.mxu0 0.0
    %77 = vmatprep.subr.mxu0 0.0
    %78 = vmatpush2.msra.mxu0 0.0
    %79 = vmatprep.subr.mxu0 0.0
    %80 = vmatpush2.msra.mxu0 0.0
    %81 = vmatprep.subr.mxu0 0.0
    %82 = vmatpush2.msra.mxu0 0.0
    %83 = vmatprep.subr.mxu0 0.0
    %84 = vmatpush2.msra.mxu0 0.0
    %85 = vmatprep.subr.mxu0 0.0
    %86 = vmatpush2.msra.mxu0 0.0
    %87 = vmatprep.subr.mxu0 0.0
    %88 = vmatpush2.msra.mxu0 0.0
    %89 = vmatprep.subr.mxu0 0.0
    %90 = vmatpush2.msra.mxu0 0.0
    %91 = vmatprep.subr.mxu0 0.0
    %92 = vmatpush2.msra.mxu0 0.0
    %93 = vmatprep.subr.mxu0 0.0
    %94 = vmatpush2.msra.mxu0 0.0
    %95 = vmatprep.subr.mxu0 0.0
    %96 = vmatpush2.msra.mxu0 0.0
    %97 = vmatprep.subr.mxu0 0.0
    %98 = vmatpush2.msra.mxu0 0.0
    %99 = vmatprep.subr.mxu0 0.0
    %100 = vmatpush2.msra.mxu0 0.0
    %101 = vmatprep.mubr.f32.mxu0 0.0
    %102 = vmatmul.mubr.f32.gmra.mxu0 %v35
    %v103 = vpop.f32.mrf.mxu0
    %v104 = vadd.f32 %v31, %v103
    %v105 = vpop.f32.mrf.mxu0
    %106 = vdwg.mxu0
    %v107 = vmax.f32 %v104, 0.0
    %v108 = vld [vmem:[%s3] sm:$0xff]
    %v109 = vld [vmem:[%s3 + $0x8] sm:$0xff]
    %v110 = vld [vmem:[%s3 + $0x10] sm:$0xff]
    %v111 = vld [vmem:[%s3 + $0x18] sm:$0xff]
    %v112 = vld [vmem:[%s4] sm:$0x1]
    %v114 = vlaneseq
    %v115 = vshrl.u32 %v114, 7
    %v116 = vsub.s32 0, %v115
    %v117 = vrot.slane %v112, %v116
    %v120 = vsel %vm33, %v107, 0
    %122 = vmatprep.subr.mxu0 0.0
    %123 = vmatpush1.msra.mxu0 0.0
    %124 = vmatprep.subr.mxu0 0.0
    %125 = vmatpush1.msra.mxu0 0.0
    %126 = vmatprep.subr.mxu0 0.0
    %127 = vmatpush1.msra.mxu0 0.0
    %128 = vmatprep.subr.mxu0 0.0
    %129 = vmatpush1.msra.mxu0 0.0
    %130 = vmatprep.subr.mxu0 0.0
    %131 = vmatpush1.msra.mxu0 0.0
    %132 = vmatprep.subr.mxu0 0.0
    %133 = vmatpush1.msra.mxu0 0.0
    %134 = vmatprep.subr.mxu0 0.0
    %135 = vmatpush1.msra.mxu0 0.0
    %136 = vmatprep.subr.mxu0 0.0
    %137 = vmatpush1.msra.mxu0 0.0
    %138 = vmatprep.subr.mxu0 0.0
    %139 = vmatpush1.msra.mxu0 0.0
    %140 = vmatprep.subr.mxu0 0.0
    %141 = vmatpush1.msra.mxu0 0.0
    %142 = vmatprep.subr.mxu0 0.0
    %143 = vmatpush1.msra.mxu0 0.0
    %144 = vmatprep.subr.mxu0 0.0
    %145 = vmatpush1.msra.mxu0 0.0
    %146 = vmatprep.subr.mxu0 0.0
    %147 = vmatpush1.msra.mxu0 %v111
    %148 = vmatprep.subr.mxu0 0.0
    %149 = vmatpush1.msra.mxu0 %v110
    %150 = vmatprep.subr.mxu0 0.0
    %151 = vmatpush1.msra.mxu0 %v109
    %152 = vmatprep.subr.mxu0 0.0
    %153 = vmatpush1.msra.mxu0 %v108
    %154 = vmatprep.subr.mxu0 0.0
    %155 = vmatpush2.msra.mxu0 0.0
    %156 = vmatprep.subr.mxu0 0.0
    %157 = vmatpush2.msra.mxu0 0.0
    %158 = vmatprep.subr.mxu0 0.0
    %159 = vmatpush2.msra.mxu0 0.0
    %160 = vmatprep.subr.mxu0 0.0
    %161 = vmatpush2.msra.mxu0 0.0
    %162 = vmatprep.subr.mxu0 0.0
    %163 = vmatpush2.msra.mxu0 0.0
    %164 = vmatprep.subr.mxu0 0.0
    %165 = vmatpush2.msra.mxu0 0.0
    %166 = vmatprep.subr.mxu0 0.0
    %167 = vmatpush2.msra.mxu0 0.0
    %168 = vmatprep.subr.mxu0 0.0
    %169 = vmatpush2.msra.mxu0 0.0
    %170 = vmatprep.subr.mxu0 0.0
    %171 = vmatpush2.msra.mxu0 0.0
    %172 = vmatprep.subr.mxu0 0.0
    %173 = vmatpush2.msra.mxu0 0.0
    %174 = vmatprep.subr.mxu0 0.0
    %175 = vmatpush2.msra.mxu0 0.0
    %176 = vmatprep.subr.mxu0 0.0
    %177 = vmatpush2.msra.mxu0 0.0
    %178 = vmatprep.subr.mxu0 0.0
    %179 = vmatpush2.msra.mxu0 0.0
    %180 = vmatprep.subr.mxu0 0.0
    %181 = vmatpush2.msra.mxu0 0.0
    %182 = vmatprep.subr.mxu0 0.0
    %183 = vmatpush2.msra.mxu0 0.0
    %184 = vmatprep.subr.mxu0 0.0
    %185 = vmatpush2.msra.mxu0 0.0
    %186 = vmatprep.mubr.f32.mxu0 0.0
    %187 = vmatmul.mubr.f32.gmra.mxu0 %v120
    %v188 = vpop.f32.mrf.mxu0
    %v189 = vadd.f32 %v117, %v188
    %v190 = vpop.f32.mrf.mxu0
    %191 = vdwg.mxu0
    %vm192 = vcmask 130048
    %193 = vst.msk [vmem:[#allocation2] sm:$0xff] %vm192, %v189
    // Predicated region
    $region22: #{tpu_custom_call.1} parent=1 // pred_check
      _
    $region23: #{tpu_custom_call.1} parent=1 // pred_check_branch
      %195 = sbr.rel (0) target = $region25
    $region24: #{tpu_custom_call.1} parent=1 // pred_region
      %s197 = ssub.s32 128, 128
      %198 = vsyncadd [#allocation3], %s197
      %s200 = sshll.u32 [#allocation2], 4
      %s201 = int_to_ptr.vmem [resolvable:$true] %s200
      %203 = dma.vmem_to_hbm [thread:$0]  %s201, 128, %s5, [#allocation3]
    $region25: #{tpu_custom_call.1} parent=1 // pred_fallthru
      _
    // Predicated region
    $region26: #{tpu_custom_call.1} parent=1 // pred_check
      _
    $region27: #{tpu_custom_call.1} parent=1 // pred_check_branch
      %205 = sbr.rel (0) target = $region29
    $region28: #{tpu_custom_call.1} parent=1 // pred_region
      %206 = dma.done [#allocation3], 128
    $region29: #{tpu_custom_call.1} parent=1 // pred_fallthru
      _
    %207 = vsyncpa [#allocation3], 1

</llo_original>
